<compile_context>
chip_gen: v6e
topology: v6e:2x2x1
jax: 0.10.0
libtpu: 0.0.40
codegen_flags: <defaults>
</compile_context>

<pallas_src>
import functools

import jax
import jax.numpy as jnp
import numpy as np
from jax import lax
from jax.experimental import pallas as pl
from jax.experimental.pallas import tpu as pltpu


_NT_DIMS = (((1,), (1,)), ((), ()))   # A @ B.T (contract last dims)


def _layernorm(x, g, b, eps):
    mu = jnp.mean(x, axis=-1, keepdims=True)
    var = jnp.mean(jnp.square(x - mu), axis=-1, keepdims=True)
    return (x - mu) * lax.rsqrt(var + eps) * g + b


def _pick_seq_tile(S, max_tile=512):
    if S <= max_tile:
        return S
    for t in range(max_tile, 7, -1):
        if S % t == 0 and t % 8 == 0:
            return t
    return S


def _vmem_limit_bytes():
    # ~75% of physical VMEM: 48 MiB on v7x (64 MiB physical), 96 MiB on v5e/v6e (128 MiB),
    # leaving headroom for compiler scratch / double buffers (perf-review v7x fix).
    try:
        info = pltpu.get_tpu_info()
        cap = int(getattr(info, "vmem_capacity_bytes", 0)) or 64 * 1024 * 1024
    except Exception:
        cap = 64 * 1024 * 1024
    return min((cap * 3) // 4, 96 * 1024 * 1024)


# --------------------------------------------------------------------------------------
# Kernel 1: LN1 + rotary attention + out_proj + residual.  grid = (B, H)
# --------------------------------------------------------------------------------------
def _attn_kernel(x_ref, cos_ref, sin_ref,
                 ln1g_ref, ln1b_ref,
                 qkvw_ref, qkvb_ref,          # (H, E, 3D) bf16 / (H, 1, 3D) f32, resident
                 ow_ref, ob_ref,              # (E, E) bf16 / (1, E) f32, resident
                 y_ref,
                 hnorm_ref, oconc_ref,        # scratch: (S, E) bf16, (H, S, D) bf16
                 *, head_dim, eps):
    hh = pl.program_id(1)                     # head index ("arbitrary" axis)
    H = oconc_ref.shape[0]
    D = head_dim
    bf16 = jnp.bfloat16

    # -- head 0 only: LayerNorm1, cached in bf16 scratch for all heads of this batch --
    @pl.when(hh == 0)
    def _():
        x = x_ref[0]                                            # (S, E) f32
        h = _layernorm(x, ln1g_ref[...], ln1b_ref[...], eps)
        hnorm_ref[...] = h.astype(hnorm_ref.dtype)

    hb = hnorm_ref[...]                                         # (S, E) bf16

    # -- fused per-head QKV projection: one (S,E)@(E,3D) matmul, f32 acc + f32 bias --
    # 1/sqrt(D) already folded into the q slice of the weights/bias host-side.
    w = qkvw_ref[hh]                                            # (E, 3D) bf16
    b = qkvb_ref[hh]                                            # (1, 3D) f32
    qkv = jnp.dot(hb, w, preferred_element_type=jnp.float32) + b    # (S, 3D) f32
    q = qkv[:, :D]
    k = qkv[:, D:2 * D]
    v = qkv[:, 2 * D:]

    cos = cos_ref[...]                 # (S, D)   [c | c]
    sin = sin_ref[...]                 # (S, D)   [-s | s]  (rotate_half sign pre-folded)

    def rope(t):                       # f32, matches torch's .float() RoPE math
        if D % 128 == 0:
            rot = pltpu.roll(t, shift=D // 2, axis=-1)          # XLU, no copies
        else:
            # TODO(synk): sub-128 head dims (64/80) fall back to a slice-swap; consider a
            #             128-lane padded layout to keep this on the XLU.
            rot = jnp.concatenate([t[:, D // 2:], t[:, :D // 2]], axis=-1)
        return t * cos + rot * sin

    q = rope(q)
    k = rope(k)

    # -- scores + numerically stable softmax; exp on bf16 (EUP bf16 path), stats in f32 --
    s = lax.dot_general(q.astype(bf16), k.astype(bf16), _NT_DIMS,
                        preferred_element_type=jnp.float32)         # (S, S) f32
    s = s - jnp.max(s, axis=-1, keepdims=True)
    p = jnp.exp(s.astype(bf16))                                      # (S, S) bf16, <= 1
    l = jnp.sum(p.astype(jnp.float32), axis=-1, keepdims=True)       # (S, 1) f32
    o = jnp.dot(p, v.astype(bf16), preferred_element_type=jnp.float32)   # (S, D) f32
    o = o * pl.reciprocal(l, approx=True)                            # normalize post-PV

    # park this head's output; head h owns columns [h*D:(h+1)*D] of the concat below
    oconc_ref[hh] = o.astype(oconc_ref.dtype)

    # -- last head: single full-width out_proj + residual + bias, one output write --
    @pl.when(hh == H - 1)
    def _():
        o_full = jnp.concatenate([oconc_ref[h] for h in range(H)], axis=-1)   # (S, E) bf16
        attn = jnp.dot(o_full, ow_ref[...], preferred_element_type=jnp.float32)
        y_ref[0] = x_ref[0] + attn + ob_ref[...]


# --------------------------------------------------------------------------------------
# Kernel 2: LN2 + CLIP MLP (quick_gelu) + residual.  grid = (B, S // tile)
# --------------------------------------------------------------------------------------
def _mlp_kernel(y_ref, ln2g_ref, ln2b_ref, f1w_ref, f1b_ref, f2w_ref, f2b_ref,
                out_ref, *, eps):
    y = y_ref[0]                                                # (ts, E) f32
    h = _layernorm(y, ln2g_ref[...], ln2b_ref[...], eps)
    m = jnp.dot(h.astype(jnp.bfloat16), f1w_ref[...],
                preferred_element_type=jnp.float32) + f1b_ref[...]
    m = m * jax.nn.sigmoid(1.702 * m)                           # quick_gelu, f32
    m = jnp.dot(m.astype(jnp.bfloat16), f2w_ref[...],
                preferred_element_type=jnp.float32) + f2b_ref[...]
    out_ref[0] = y + m


# --------------------------------------------------------------------------------------
# Wrapper
# --------------------------------------------------------------------------------------
def mlcd_encoder_layer(x, rotary_pos_emb, params, *, num_heads, eps=1e-5, max_seq_tile=512):
    """x: (B, S, E); rotary_pos_emb: (S, head_dim // 2) freqs (as in the torch module)."""
    B, S, E = x.shape
    H = num_heads
    D = E // H
    assert H * D == E, "embed_dim must be divisible by num_heads"
    I = params['fc1_w'].shape[1]
    f32, bf16 = jnp.float32, jnp.bfloat16
    vmem_limit = _vmem_limit_bytes()

    # ---------- host-side preprocessing (free relative to the kernels) ----------
    freqs = rotary_pos_emb.astype(f32)                          # (S, D//2)
    cos_h, sin_h = jnp.cos(freqs), jnp.sin(freqs)
    cos = jnp.concatenate([cos_h, cos_h], axis=-1)              # (S, D)
    sin_signed = jnp.concatenate([-sin_h, sin_h], axis=-1)      # rotate_half sign folded

    scale = D ** -0.5                                           # folded into q weights/bias

    def head_major(w):        # (E, E) [in, out] -> (H, E, D)
        return jnp.transpose(w.reshape(E, H, D), (1, 0, 2))

    qkvw = jnp.concatenate(                                      # (H, E, 3D) bf16
        [head_major(params['q_w'] * scale),
         head_major(params['k_w']),
         head_major(params['v_w'])], axis=-1).astype(bf16)
    qkvb = jnp.concatenate(                                      # (H, 1, 3D) f32
        [(params['q_b'] * scale).astype(f32).reshape(H, 1, D),
         params['k_b'].astype(f32).reshape(H, 1, D),
         params['v_b'].astype(f32).reshape(H, 1, D)], axis=-1)

    ow = params['o_w'].astype(bf16)                              # (E, E), concat-head input order
    ob = params['o_b'].astype(f32).reshape(1, E)
    ln1g = params['ln1_g'].astype(f32).reshape(1, E)
    ln1b = params['ln1_b'].astype(f32).reshape(1, E)
    ln2g = params['ln2_g'].astype(f32).reshape(1, E)
    ln2b = params['ln2_b'].astype(f32).reshape(1, E)
    f1w = params['fc1_w'].astype(bf16)
    f2w = params['fc2_w'].astype(bf16)
    f1b = params['fc1_b'].astype(f32).reshape(1, I)
    f2b = params['fc2_b'].astype(f32).reshape(1, E)

    x = x.astype(f32)

    # ---------- call 1: attention, grid over (batch, head) ----------
    # Constant index maps -> weights/tables DMA'd once and resident for the whole grid.
    const_a = lambda shape: pl.BlockSpec(shape, lambda b, h: tuple(0 for _ in shape))

    attn_cost = pl.CostEstimate(
        flops=int(B * (8 * S * E * E + 4 * S * S * E)),
        transcendentals=int(B * H * S * (S + 1)),
        bytes_accessed=int(8 * B * S * E + 8 * E * E + 8 * S * D + 48 * E),
    )
    y = pl.pallas_call(
        functools.partial(_attn_kernel, head_dim=D, eps=eps),
        out_shape=jax.ShapeDtypeStruct((B, S, E), f32),
        grid=(B, H),
        in_specs=[
            pl.BlockSpec((1, S, E), lambda b, h: (b, 0, 0)),    # x (resident across heads)
            const_a((S, D)), const_a((S, D)),                   # cos, signed sin
            const_a((1, E)), const_a((1, E)),                   # LN1 gamma / beta
            const_a((H, E, 3 * D)),                             # stacked qkv weights (resident)
            const_a((H, 1, 3 * D)),                             # stacked qkv biases (resident)
            const_a((E, E)),                                    # out_proj weight (resident)
            const_a((1, E)),                                    # out_proj bias
        ],
        out_specs=pl.BlockSpec((1, S, E), lambda b, h: (b, 0, 0)),   # written at last head only
        scratch_shapes=[
            pltpu.VMEM((S, E), bf16),        # cached LN1 output
            pltpu.VMEM((H, S, D), bf16),     # per-head attention outputs (pre out_proj)
        ],
        compiler_params=pltpu.CompilerParams(
            dimension_semantics=("parallel", "arbitrary"),
            vmem_limit_bytes=vmem_limit),
        cost_estimate=attn_cost,
    )(x, cos, sin_signed, ln1g, ln1b, qkvw, qkvb, ow, ob)

    # ---------- call 2: MLP, grid over (batch, seq tiles) ----------
    ts = _pick_seq_tile(S, max_seq_tile)
    const_m = lambda shape: pl.BlockSpec(shape, lambda b, s: tuple(0 for _ in shape))

    mlp_cost = pl.CostEstimate(
        flops=int(4 * B * S * E * I),
        transcendentals=int(B * S * I),
        bytes_accessed=int(8 * B * S * E + 4 * E * I + 4 * (I + 3 * E)),
    )
    out = pl.pallas_call(
        functools.partial(_mlp_kernel, eps=eps),
        out_shape=jax.ShapeDtypeStruct((B, S, E), f32),
        grid=(B, S // ts),
        in_specs=[
            pl.BlockSpec((1, ts, E), lambda b, s: (b, s, 0)),   # attention output (+residual)
            const_m((1, E)), const_m((1, E)),                   # LN2 gamma / beta
            const_m((E, I)), const_m((1, I)),                   # fc1 (resident)
            const_m((I, E)), const_m((1, E)),                   # fc2 (resident)
        ],
        out_specs=pl.BlockSpec((1, ts, E), lambda b, s: (b, s, 0)),
        compiler_params=pltpu.CompilerParams(
            dimension_semantics=("parallel", "parallel"),
            vmem_limit_bytes=vmem_limit),
        cost_estimate=mlp_cost,
    )(y, ln2g, ln2b, f1w, f1b, f2w, f2b)

    return out


# --------------------------------------------------------------------------------------
# Pure-JAX reference mirroring the PyTorch forward semantics (f32 throughout).
# --------------------------------------------------------------------------------------
def reference(x, rotary_pos_emb, p, H, eps=1e-5):
    B, S, E = x.shape
    D = E // H
    cos = jnp.concatenate([jnp.cos(rotary_pos_emb)] * 2, axis=-1)   # (S, D)
    sin = jnp.concatenate([jnp.sin(rotary_pos_emb)] * 2, axis=-1)

    def ln(v, g, b):
        mu = v.mean(-1, keepdims=True)
        var = ((v - mu) ** 2).mean(-1, keepdims=True)
        return (v - mu) / jnp.sqrt(var + eps) * g[0] + b[0]

    h = ln(x, p['ln1_g'], p['ln1_b'])
    q = (h @ p['q_w'] + p['q_b'][0]).reshape(B, S, H, D)
    k = (h @ p['k_w'] + p['k_b'][0]).reshape(B, S, H, D)
    v = (h @ p['v_w'] + p['v_b'][0]).reshape(B, S, H, D)

    def rope(t):
        c = cos[None, :, None, :]
        s_ = sin[None, :, None, :]
        t1, t2 = t[..., :D // 2], t[..., D // 2:]
        rot = jnp.concatenate([-t2, t1], axis=-1)
        return t * c + rot * s_

    q, k = rope(q), rope(k)
    scores = jnp.einsum('bqhd,bkhd->bhqk', q, k) / (D ** 0.5)
    pattn = jax.nn.softmax(scores, axis=-1)
    o = jnp.einsum('bhqk,bkhd->bqhd', pattn, v).reshape(B, S, E)
    o = o @ p['o_w'] + p['o_b'][0]
    x = x + o
    h2 = ln(x, p['ln2_g'], p['ln2_b'])
    m = h2 @ p['fc1_w'] + p['fc1_b'][0]
    m = m * jax.nn.sigmoid(1.702 * m)
    m = m @ p['fc2_w'] + p['fc2_b'][0]
    return x + m


if __name__ == "__main__":
    # Small config consistent with the module: hidden=32, heads=4, head_dim=8,
    # intermediate=64, batch=2, seq=8.
    B, S, E, H, I = 2, 8, 32, 4, 64
    D = E // H

    key = jax.random.PRNGKey(0)
    keys = jax.random.split(key, 16)

    def init(k, shape, scale=0.02):
        return (scale * jax.random.normal(k, shape)).astype(jnp.float32)

    # Weights stored as (in, out) so y = x @ W + b (transpose of torch's nn.Linear).
    params = {
        'ln1_g': jnp.ones((1, E), jnp.float32),
        'ln1_b': jnp.zeros((1, E), jnp.float32),
        'q_w': init(keys[0], (E, E)),  'q_b': init(keys[1], (1, E)),
        'k_w': init(keys[2], (E, E)),  'k_b': init(keys[3], (1, E)),
        'v_w': init(keys[4], (E, E)),  'v_b': init(keys[5], (1, E)),
        'o_w': init(keys[6], (E, E)),  'o_b': init(keys[7], (1, E)),
        'ln2_g': jnp.ones((1, E), jnp.float32),
        'ln2_b': jnp.zeros((1, E), jnp.float32),
        'fc1_w': init(keys[8], (E, I)),  'fc1_b': init(keys[9], (1, I)),
        'fc2_w': init(keys[10], (I, E)), 'fc2_b': init(keys[11], (1, E)),
    }

    x = jax.random.normal(keys[12], (B, S, E), jnp.float32)

    # rotary_pos_emb: freqs of shape (seq, head_dim // 2), as fed to the torch module.
    pos = jnp.arange(S, dtype=jnp.float32)
    inv_freq = 1.0 / (10000.0 ** (jnp.arange(0, D // 2, dtype=jnp.float32) / (D // 2)))
    freqs = pos[:, None] * inv_freq[None, :]                     # (S, D//2)

    out = mlcd_encoder_layer(x, freqs, params, num_heads=H)
    out = jax.block_until_ready(out)

    ref = jax.block_until_ready(reference(x, freqs, params, H))
    assert out.shape == (B, S, E)
    assert np.allclose(np.asarray(out), np.asarray(ref), atol=2e-2, rtol=2e-2), \
        "Pallas kernel output mismatch vs JAX reference"

    print("KERNEL_OK")
</pallas_src>

<mosaic_0001>
module attributes {stable_mosaic.version = 11 : i64} {
  func.func @_attn_kernel(%arg0: i32, %arg1: i32, %arg2: memref<1x8x32xf32, #tpu.memory_space<vmem>>, %arg3: memref<8x8xf32, #tpu.memory_space<vmem>>, %arg4: memref<8x8xf32, #tpu.memory_space<vmem>>, %arg5: memref<1x32xf32, #tpu.memory_space<vmem>>, %arg6: memref<1x32xf32, #tpu.memory_space<vmem>>, %arg7: memref<4x32x24xbf16, #tpu.memory_space<vmem>>, %arg8: memref<4x1x24xf32, #tpu.memory_space<vmem>>, %arg9: memref<32x32xbf16, #tpu.memory_space<vmem>>, %arg10: memref<1x32xf32, #tpu.memory_space<vmem>>, %arg11: memref<1x8x32xf32, #tpu.memory_space<vmem>>, %arg12: memref<8x32xbf16, #tpu.memory_space<vmem>>, %arg13: memref<4x8x8xbf16, #tpu.memory_space<vmem>>) attributes {dimension_semantics = [#tpu.dimension_semantics<parallel>, #tpu.dimension_semantics<arbitrary>], iteration_bounds = array<i64: 2, 4>, scalar_prefetch = 0 : i64, scratch_operands = 2 : i64, tpu.core_type = #tpu.core_type<tc>, window_params = [{transform_indices = @transform_0, window_bounds = array<i64: 1, 8, 32>}, {pipeline_mode = #tpu.pipeline_mode<synchronous>, transform_indices = @transform_1, window_bounds = array<i64: 8, 8>}, {pipeline_mode = #tpu.pipeline_mode<synchronous>, transform_indices = @transform_2, window_bounds = array<i64: 8, 8>}, {pipeline_mode = #tpu.pipeline_mode<synchronous>, transform_indices = @transform_3, window_bounds = array<i64: 1, 32>}, {pipeline_mode = #tpu.pipeline_mode<synchronous>, transform_indices = @transform_4, window_bounds = array<i64: 1, 32>}, {pipeline_mode = #tpu.pipeline_mode<synchronous>, transform_indices = @transform_5, window_bounds = array<i64: 4, 32, 24>}, {pipeline_mode = #tpu.pipeline_mode<synchronous>, transform_indices = @transform_6, window_bounds = array<i64: 4, 1, 24>}, {pipeline_mode = #tpu.pipeline_mode<synchronous>, transform_indices = @transform_7, window_bounds = array<i64: 32, 32>}, {pipeline_mode = #tpu.pipeline_mode<synchronous>, transform_indices = @transform_8, window_bounds = array<i64: 1, 32>}, {transform_indices = @transform_9, window_bounds = array<i64: 1, 8, 32>}]} {
    %c0_i32 = arith.constant 0 : i32
    %0 = arith.cmpi eq, %arg1, %c0_i32 : i32
    %1 = arith.extui %0 : i1 to i32
    %c0_i32_0 = arith.constant 0 : i32
    %2 = arith.cmpi ne, %1, %c0_i32_0 : i32
    scf.if %2 {
      %c0_17 = arith.constant 0 : index
      %c0_18 = arith.constant 0 : index
      %c0_19 = arith.constant 0 : index
      %55 = vector.load %arg2[%c0_17, %c0_18, %c0_19] : memref<1x8x32xf32, #tpu.memory_space<vmem>>, vector<1x8x32xf32>
      %56 = vector.shape_cast %55 : vector<1x8x32xf32> to vector<8x32xf32>
      %c0_20 = arith.constant 0 : index
      %c0_21 = arith.constant 0 : index
      %57 = vector.load %arg5[%c0_20, %c0_21] : memref<1x32xf32, #tpu.memory_space<vmem>>, vector<1x32xf32>
      %c0_22 = arith.constant 0 : index
      %c0_23 = arith.constant 0 : index
      %58 = vector.load %arg6[%c0_22, %c0_23] : memref<1x32xf32, #tpu.memory_space<vmem>>, vector<1x32xf32>
      %cst_24 = arith.constant dense<0.000000e+00> : vector<8xf32>
      %59 = vector.multi_reduction <add>, %56, %cst_24 [1] : vector<8x32xf32> to vector<8xf32>
      %60 = vector.shape_cast %59 : vector<8xf32> to vector<8x1xf32>
      %cst_25 = arith.constant 3.200000e+01 : f32
      %61 = vector.broadcast %cst_25 : f32 to vector<8x1xf32>
      %62 = arith.divf %60, %61 : vector<8x1xf32>
      %63 = vector.broadcast %62 : vector<8x1xf32> to vector<8x32xf32>
      %64 = arith.subf %56, %63 : vector<8x32xf32>
      %65 = arith.mulf %64, %64 : vector<8x32xf32>
      %cst_26 = arith.constant dense<0.000000e+00> : vector<8xf32>
      %66 = vector.multi_reduction <add>, %65, %cst_26 [1] : vector<8x32xf32> to vector<8xf32>
      %67 = vector.shape_cast %66 : vector<8xf32> to vector<8x1xf32>
      %cst_27 = arith.constant 3.200000e+01 : f32
      %68 = vector.broadcast %cst_27 : f32 to vector<8x1xf32>
      %69 = arith.divf %67, %68 : vector<8x1xf32>
      %70 = vector.broadcast %62 : vector<8x1xf32> to vector<8x32xf32>
      %71 = arith.subf %56, %70 : vector<8x32xf32>
      %cst_28 = arith.constant 9.99999974E-6 : f32
      %72 = vector.broadcast %cst_28 : f32 to vector<8x1xf32>
      %73 = arith.addf %69, %72 : vector<8x1xf32>
      %74 = math.rsqrt %73 : vector<8x1xf32>
      %75 = vector.broadcast %74 : vector<8x1xf32> to vector<8x32xf32>
      %76 = arith.mulf %71, %75 : vector<8x32xf32>
      %77 = vector.broadcast %57 : vector<1x32xf32> to vector<8x32xf32>
      %78 = arith.mulf %76, %77 : vector<8x32xf32>
      %79 = vector.broadcast %58 : vector<1x32xf32> to vector<8x32xf32>
      %80 = arith.addf %78, %79 : vector<8x32xf32>
      %81 = arith.truncf %80 : vector<8x32xf32> to vector<8x32xbf16>
      %c0_29 = arith.constant 0 : index
      %c0_30 = arith.constant 0 : index
      %82 = vector.load %arg12[%c0_29, %c0_30] : memref<8x32xbf16, #tpu.memory_space<vmem>>, vector<8x32xbf16>
      tpu.vector_store %arg12[%c0_29, %c0_30], %81 {strides = array<i32>} : memref<8x32xbf16, #tpu.memory_space<vmem>>, vector<8x32xbf16>,
    } else {
    }
    %c0 = arith.constant 0 : index
    %c0_1 = arith.constant 0 : index
    %3 = vector.load %arg12[%c0, %c0_1] : memref<8x32xbf16, #tpu.memory_space<vmem>>, vector<8x32xbf16>
    %4 = arith.index_cast %arg1 : i32 to index
    %c0_2 = arith.constant 0 : index
    %c0_3 = arith.constant 0 : index
    %5 = vector.load %arg7[%4, %c0_2, %c0_3] : memref<4x32x24xbf16, #tpu.memory_space<vmem>>, vector<1x32x24xbf16>
    %6 = vector.shape_cast %5 : vector<1x32x24xbf16> to vector<32x24xbf16>
    %7 = arith.index_cast %arg1 : i32 to index
    %c0_4 = arith.constant 0 : index
    %c0_5 = arith.constant 0 : index
    %8 = vector.load %arg8[%7, %c0_4, %c0_5] : memref<4x1x24xf32, #tpu.memory_space<vmem>>, vector<1x1x24xf32>
    %9 = vector.shape_cast %8 : vector<1x1x24xf32> to vector<1x24xf32>
    %cst = arith.constant dense<0.000000e+00> : vector<8x24xf32>
    %10 = tpu.matmul %3, %6, %cst {dimension_numbers = #tpu.dot_dimension_numbers<[1], [0], [0], [1], [0, 0, 1, 1], [], []>} : vector<8x32xbf16>, vector<32x24xbf16>, vector<8x24xf32> -> vector<8x24xf32>
    %11 = vector.broadcast %9 : vector<1x24xf32> to vector<8x24xf32>
    %12 = arith.addf %10, %11 : vector<8x24xf32>
    %13 = vector.extract_strided_slice %12 {offsets = [0, 0], sizes = [8, 8], strides = [1, 1]} : vector<8x24xf32> to vector<8x8xf32>
    %14 = vector.extract_strided_slice %12 {offsets = [0, 8], sizes = [8, 8], strides = [1, 1]} : vector<8x24xf32> to vector<8x8xf32>
    %15 = vector.extract_strided_slice %12 {offsets = [0, 16], sizes = [8, 8], strides = [1, 1]} : vector<8x24xf32> to vector<8x8xf32>
    %c0_6 = arith.constant 0 : index
    %c0_7 = arith.constant 0 : index
    %16 = vector.load %arg3[%c0_6, %c0_7] : memref<8x8xf32, #tpu.memory_space<vmem>>, vector<8x8xf32>
    %c0_8 = arith.constant 0 : index
    %c0_9 = arith.constant 0 : index
    %17 = vector.load %arg4[%c0_8, %c0_9] : memref<8x8xf32, #tpu.memory_space<vmem>>, vector<8x8xf32>
    %18 = vector.extract_strided_slice %13 {offsets = [0, 4], sizes = [8, 4], strides = [1, 1]} : vector<8x8xf32> to vector<8x4xf32>
    %19 = vector.extract_strided_slice %13 {offsets = [0, 0], sizes = [8, 4], strides = [1, 1]} : vector<8x8xf32> to vector<8x4xf32>
    %20 = tpu.concatenate %18, %19 in 1 : vector<8x4xf32>, vector<8x4xf32> -> vector<8x8xf32>
    %21 = arith.mulf %13, %16 : vector<8x8xf32>
    %22 = arith.mulf %20, %17 : vector<8x8xf32>
    %23 = arith.addf %21, %22 : vector<8x8xf32>
    %24 = vector.extract_strided_slice %14 {offsets = [0, 4], sizes = [8, 4], strides = [1, 1]} : vector<8x8xf32> to vector<8x4xf32>
    %25 = vector.extract_strided_slice %14 {offsets = [0, 0], sizes = [8, 4], strides = [1, 1]} : vector<8x8xf32> to vector<8x4xf32>
    %26 = tpu.concatenate %24, %25 in 1 : vector<8x4xf32>, vector<8x4xf32> -> vector<8x8xf32>
    %27 = arith.mulf %14, %16 : vector<8x8xf32>
    %28 = arith.mulf %26, %17 : vector<8x8xf32>
    %29 = arith.addf %27, %28 : vector<8x8xf32>
    %30 = arith.truncf %23 : vector<8x8xf32> to vector<8x8xbf16>
    %31 = arith.truncf %29 : vector<8x8xf32> to vector<8x8xbf16>
    %cst_10 = arith.constant dense<0.000000e+00> : vector<8x8xf32>
    %32 = tpu.matmul %30, %31, %cst_10 {dimension_numbers = #tpu.dot_dimension_numbers<[1], [1], [0], [0], [0, 0, 1, 0], [], []>} : vector<8x8xbf16>, vector<8x8xbf16>, vector<8x8xf32> -> vector<8x8xf32>
    %cst_11 = arith.constant dense<0xFF800000> : vector<8xf32>
    %33 = vector.multi_reduction <maximumf>, %32, %cst_11 [1] : vector<8x8xf32> to vector<8xf32>
    %34 = vector.shape_cast %33 : vector<8xf32> to vector<8x1xf32>
    %35 = vector.broadcast %34 : vector<8x1xf32> to vector<8x8xf32>
    %36 = arith.subf %32, %35 : vector<8x8xf32>
    %37 = arith.truncf %36 : vector<8x8xf32> to vector<8x8xbf16>
    %38 = math.exp %37 : vector<8x8xbf16>
    %39 = arith.extf %38 : vector<8x8xbf16> to vector<8x8xf32>
    %cst_12 = arith.constant dense<0.000000e+00> : vector<8xf32>
    %40 = vector.multi_reduction <add>, %39, %cst_12 [1] : vector<8x8xf32> to vector<8xf32>
    %41 = vector.shape_cast %40 : vector<8xf32> to vector<8x1xf32>
    %42 = arith.truncf %15 : vector<8x8xf32> to vector<8x8xbf16>
    %cst_13 = arith.constant dense<0.000000e+00> : vector<8x8xf32>
    %43 = tpu.matmul %38, %42, %cst_13 {dimension_numbers = #tpu.dot_dimension_numbers<[1], [0], [0], [1], [0, 0, 1, 1], [], []>} : vector<8x8xbf16>, vector<8x8xbf16>, vector<8x8xf32> -> vector<8x8xf32>
    %44 = tpu.reciprocal %41 {approx = true} : vector<8x1xf32> -> vector<8x1xf32>
    %45 = vector.broadcast %44 : vector<8x1xf32> to vector<8x8xf32>
    %46 = arith.mulf %43, %45 : vector<8x8xf32>
    %47 = arith.truncf %46 : vector<8x8xf32> to vector<8x8xbf16>
    %48 = arith.index_cast %arg1 : i32 to index
    %c0_14 = arith.constant 0 : index
    %c0_15 = arith.constant 0 : index
    %49 = vector.load %arg13[%48, %c0_14, %c0_15] : memref<4x8x8xbf16, #tpu.memory_space<vmem>>, vector<1x8x8xbf16>
    %50 = vector.shape_cast %49 : vector<1x8x8xbf16> to vector<8x8xbf16>
    %51 = vector.shape_cast %47 : vector<8x8xbf16> to vector<1x8x8xbf16>
    tpu.vector_store %arg13[%48, %c0_14, %c0_15], %51 {strides = array<i32>} : memref<4x8x8xbf16, #tpu.memory_space<vmem>>, vector<1x8x8xbf16>,
    %c3_i32 = arith.constant 3 : i32
    %52 = arith.cmpi eq, %arg1, %c3_i32 : i32
    %53 = arith.extui %52 : i1 to i32
    %c0_i32_16 = arith.constant 0 : i32
    %54 = arith.cmpi ne, %53, %c0_i32_16 : i32
    scf.if %54 {
      %c0_17 = arith.constant 0 : index
      %c0_18 = arith.constant 0 : index
      %c0_19 = arith.constant 0 : index
      %55 = vector.load %arg13[%c0_17, %c0_18, %c0_19] : memref<4x8x8xbf16, #tpu.memory_space<vmem>>, vector<1x8x8xbf16>
      %56 = vector.shape_cast %55 : vector<1x8x8xbf16> to vector<8x8xbf16>
      %c1 = arith.constant 1 : index
      %c0_20 = arith.constant 0 : index
      %c0_21 = arith.constant 0 : index
      %57 = vector.load %arg13[%c1, %c0_20, %c0_21] : memref<4x8x8xbf16, #tpu.memory_space<vmem>>, vector<1x8x8xbf16>
      %58 = vector.shape_cast %57 : vector<1x8x8xbf16> to vector<8x8xbf16>
      %c2 = arith.constant 2 : index
      %c0_22 = arith.constant 0 : index
      %c0_23 = arith.constant 0 : index
      %59 = vector.load %arg13[%c2, %c0_22, %c0_23] : memref<4x8x8xbf16, #tpu.memory_space<vmem>>, vector<1x8x8xbf16>
      %60 = vector.shape_cast %59 : vector<1x8x8xbf16> to vector<8x8xbf16>
      %c3 = arith.constant 3 : index
      %c0_24 = arith.constant 0 : index
      %c0_25 = arith.constant 0 : index
      %61 = vector.load %arg13[%c3, %c0_24, %c0_25] : memref<4x8x8xbf16, #tpu.memory_space<vmem>>, vector<1x8x8xbf16>
      %62 = vector.shape_cast %61 : vector<1x8x8xbf16> to vector<8x8xbf16>
      %63 = tpu.concatenate %56, %58, %60, %62 in 1 : vector<8x8xbf16>, vector<8x8xbf16>, vector<8x8xbf16>, vector<8x8xbf16> -> vector<8x32xbf16>
      %c0_26 = arith.constant 0 : index
      %c0_27 = arith.constant 0 : index
      %64 = vector.load %arg9[%c0_26, %c0_27] : memref<32x32xbf16, #tpu.memory_space<vmem>>, vector<32x32xbf16>
      %cst_28 = arith.constant dense<0.000000e+00> : vector<8x32xf32>
      %65 = tpu.matmul %63, %64, %cst_28 {dimension_numbers = #tpu.dot_dimension_numbers<[1], [0], [0], [1], [0, 0, 1, 1], [], []>} : vector<8x32xbf16>, vector<32x32xbf16>, vector<8x32xf32> -> vector<8x32xf32>
      %c0_29 = arith.constant 0 : index
      %c0_30 = arith.constant 0 : index
      %c0_31 = arith.constant 0 : index
      %66 = vector.load %arg2[%c0_29, %c0_30, %c0_31] : memref<1x8x32xf32, #tpu.memory_space<vmem>>, vector<1x8x32xf32>
      %67 = vector.shape_cast %66 : vector<1x8x32xf32> to vector<8x32xf32>
      %68 = arith.addf %67, %65 : vector<8x32xf32>
      %c0_32 = arith.constant 0 : index
      %c0_33 = arith.constant 0 : index
      %69 = vector.load %arg10[%c0_32, %c0_33] : memref<1x32xf32, #tpu.memory_space<vmem>>, vector<1x32xf32>
      %70 = vector.broadcast %69 : vector<1x32xf32> to vector<8x32xf32>
      %71 = arith.addf %68, %70 : vector<8x32xf32>
      %c0_34 = arith.constant 0 : index
      %c0_35 = arith.constant 0 : index
      %c0_36 = arith.constant 0 : index
      %72 = vector.load %arg11[%c0_34, %c0_35, %c0_36] : memref<1x8x32xf32, #tpu.memory_space<vmem>>, vector<1x8x32xf32>
      %73 = vector.shape_cast %72 : vector<1x8x32xf32> to vector<8x32xf32>
      %74 = vector.shape_cast %71 : vector<8x32xf32> to vector<1x8x32xf32>
      tpu.vector_store %arg11[%c0_34, %c0_35, %c0_36], %74 {strides = array<i32>} : memref<1x8x32xf32, #tpu.memory_space<vmem>>, vector<1x8x32xf32>,
    } else {
    }
    return
  }
  func.func @transform_0(%arg0: i32, %arg1: i32) -> (i32, i32, i32) {
    %c0_i32 = arith.constant 0 : i32
    %c0_i32_0 = arith.constant 0 : i32
    %c0_i32_1 = arith.constant 0 : i32
    return %arg0, %c0_i32, %c0_i32_0 : i32, i32, i32
  }
  func.func @transform_1(%arg0: i32, %arg1: i32) -> (i32, i32) {
    %c0_i32 = arith.constant 0 : i32
    %c0_i32_0 = arith.constant 0 : i32
    %c0_i32_1 = arith.constant 0 : i32
    return %c0_i32, %c0_i32_0 : i32, i32
  }
  func.func @transform_2(%arg0: i32, %arg1: i32) -> (i32, i32) {
    %c0_i32 = arith.constant 0 : i32
    %c0_i32_0 = arith.constant 0 : i32
    %c0_i32_1 = arith.constant 0 : i32
    return %c0_i32, %c0_i32_0 : i32, i32
  }
  func.func @transform_3(%arg0: i32, %arg1: i32) -> (i32, i32) {
    %c0_i32 = arith.constant 0 : i32
    %c0_i32_0 = arith.constant 0 : i32
    %c0_i32_1 = arith.constant 0 : i32
    return %c0_i32, %c0_i32_0 : i32, i32
  }
  func.func @transform_4(%arg0: i32, %arg1: i32) -> (i32, i32) {
    %c0_i32 = arith.constant 0 : i32
    %c0_i32_0 = arith.constant 0 : i32
    %c0_i32_1 = arith.constant 0 : i32
    return %c0_i32, %c0_i32_0 : i32, i32
  }
  func.func @transform_5(%arg0: i32, %arg1: i32) -> (i32, i32, i32) {
    %c0_i32 = arith.constant 0 : i32
    %c0_i32_0 = arith.constant 0 : i32
    %c0_i32_1 = arith.constant 0 : i32
    %c0_i32_2 = arith.constant 0 : i32
    return %c0_i32, %c0_i32_0, %c0_i32_1 : i32, i32, i32
  }
  func.func @transform_6(%arg0: i32, %arg1: i32) -> (i32, i32, i32) {
    %c0_i32 = arith.constant 0 : i32
    %c0_i32_0 = arith.constant 0 : i32
    %c0_i32_1 = arith.constant 0 : i32
    %c0_i32_2 = arith.constant 0 : i32
    return %c0_i32, %c0_i32_0, %c0_i32_1 : i32, i32, i32
  }
  func.func @transform_7(%arg0: i32, %arg1: i32) -> (i32, i32) {
    %c0_i32 = arith.constant 0 : i32
    %c0_i32_0 = arith.constant 0 : i32
    %c0_i32_1 = arith.constant 0 : i32
    return %c0_i32, %c0_i32_0 : i32, i32
  }
  func.func @transform_8(%arg0: i32, %arg1: i32) -> (i32, i32) {
    %c0_i32 = arith.constant 0 : i32
    %c0_i32_0 = arith.constant 0 : i32
    %c0_i32_1 = arith.constant 0 : i32
    return %c0_i32, %c0_i32_0 : i32, i32
  }
  func.func @transform_9(%arg0: i32, %arg1: i32) -> (i32, i32, i32) {
    %c0_i32 = arith.constant 0 : i32
    %c0_i32_0 = arith.constant 0 : i32
    %c0_i32_1 = arith.constant 0 : i32
    return %arg0, %c0_i32, %c0_i32_0 : i32, i32, i32
  }
}

</mosaic_0001>

<llo_original>
// kernel: tpu_custom_call.1
$region0: #{tpu_custom_call.1}
  #allocation0 [shape = 'u32[]', space=smem, size = 0x4, offset = 0x4, fixed_abs, tag = 'smem constant byte address 0x4 - core index']
  #allocation1 [shape = 'u32[144,128]{1,0:T(1,128)}', space=vmem, size = 0x12000, scoped, tag = 'internal scratch']
  #allocation2 [shape = 'bf16[8,32]{1,0:T(8,128)(2,1)}', space=vmem, size = 0x800, scoped, tag = 'scratch operand']
  #allocation3 [shape = 'bf16[4,8,8]{2,1,0:T(8,128)(2,1)}', space=vmem, size = 0x2000, scoped, tag = 'scratch operand']
  %s0 = inlined_call_operand.vmem [shape: f32[2,8,32], index: 0, kind: input, shape index: {}]
  %s1 = inlined_call_operand.vmem [shape: f32[8,8], index: 1, kind: input, shape index: {}]
  %s2 = inlined_call_operand.vmem [shape: f32[8,8], index: 2, kind: input, shape index: {}]
  %s3 = inlined_call_operand.vmem [shape: f32[1,32], index: 3, kind: input, shape index: {}]
  %s4 = inlined_call_operand.vmem [shape: f32[1,32], index: 4, kind: input, shape index: {}]
  %s5 = inlined_call_operand.vmem [shape: bf16[4,32,24], index: 5, kind: input, shape index: {}]
  %s6 = inlined_call_operand.vmem [shape: f32[4,1,24], index: 6, kind: input, shape index: {}]
  %s7 = inlined_call_operand.vmem [shape: bf16[32,32], index: 7, kind: input, shape index: {}]
  %s8 = inlined_call_operand.vmem [shape: f32[1,32], index: 8, kind: input, shape index: {}]
  %s9 = inlined_call_operand.hbm [shape: f32[2,8,32], index: 9, kind: output, shape index: {}]
  %s10 = sld [smem:[#allocation0]]
  $region77: #{tpu_custom_call.1} parent=0
    _
  %s12 = ssub.s32 1, %s10
  %s13 = scalar_select 0, %s12, %s10
  $region1: #{tpu_custom_call.1} parent=0
    #allocation4 [shape = 'u8[8192]{0}', space=vmem, size = 0x2000, scoped, tag = 'output window, operand 0']
    #allocation5 [shape = 's32[2]{0}', space=sflag, size = 0x8, scoped, tag = 'scoped memory for tpu_custom_call.1']
    %14 = vsyncpa [#allocation5], 0
    %s15 = scalar_lea.sflag [#allocation5], 1
    %16 = vsyncpa %s15, 0
    loop: start=0, step=1, limit=10
    $region2: #{tpu_custom_call.1} parent=1 // loop_pre_header
      _
    $region3: #{tpu_custom_call.1} parent=1 // loop_header
      %s18 = sphi 0, %s22
      %p19 = scmp.ge.s32.totalorder %s18, 10
      %s25 = sphi 0, %s37
      %s26 = sphi 0, %s33
      %s27 = sphi 0, %s25
      %s28 = sphi 0, %s26
      %s29 = sphi 0, %s27
      %s30 = sphi 0, %s28
      %s40 = sphi 0, %s42
      %s43 = sphi 0, %s40
      %s44 = sphi 0, %s43
      %s60 = sphi 0, %s44
      %s64 = sphi 0, %s64
      %s66 = sphi 0, %s64
      %s67 = sphi 0, %s66
      %s81 = sphi 0, %s67
      %s85 = sphi 0, %s85
      %s87 = sphi 0, %s85
      %s88 = sphi 0, %s87
      %s102 = sphi 0, %s88
      %s106 = sphi 0, %s106
      %s108 = sphi 0, %s106
      %s109 = sphi 0, %s108
      %s123 = sphi 0, %s109
      %s127 = sphi 0, %s127
      %s129 = sphi 0, %s127
      %s130 = sphi 0, %s129
      %s144 = sphi 0, %s130
      %s148 = sphi 0, %s148
      %s150 = sphi 0, %s148
      %s151 = sphi 0, %s150
      %s165 = sphi 0, %s151
      %s169 = sphi 0, %s169
      %s171 = sphi 0, %s169
      %s172 = sphi 0, %s171
      %s186 = sphi 0, %s172
      %s190 = sphi 0, %s190
      %s192 = sphi 0, %s190
      %s193 = sphi 0, %s192
      %s207 = sphi 0, %s193
      %s211 = sphi 0, %s211
      %s213 = sphi 0, %s211
      %s214 = sphi 0, %s213
      %s228 = sphi 0, %s214
      %s234 = sphi 0, %s236
      %s237 = sphi 0, %s234
      %s238 = sphi 0, %s237
      %s254 = sphi 0, %s238
    $region4: #{tpu_custom_call.1} parent=1 // loop_header_branch
      %21 = sbr.rel (%p19) target = $region8
    $region5: #{tpu_custom_call.1} parent=1 // loop_body
      %s23 = ssub.s32 %s18, 1
      %s24 = ssub.s32 %s18, 2
      %s31 = sadd.s32 1, %s26
      %p32 = scmp.ge.s32.totalorder %s31, 4
      %s33 = scalar_select %p32, 0, %s31
      %s34 = sadd.s32 1, %s25
      %s35 = scalar_select %p32, %s34, %s25
      %p36 = scmp.ge.s32.totalorder %s35, 2
      %s37 = scalar_select %p36, 0, %s35
      %s38 = ssub.s32 %s25, %s37
      %p39 = scmp.eq.s32.totalorder %s38, 0
      %s41 = sadd.s32 %s40, 1
      %s42 = scalar_select %p39, %s40, %s41
      %p45 = pneg %p39
      %p46 = scmp.eq.s32.totalorder %s18, 7
      %p47 = por %p45, %p46
      %p48 = scmp.ne.s32.totalorder %s40, %s43
      %p49 = scmp.eq.s32.totalorder %s18, 0
      %p50 = por %p48, %p49
      %p51 = scmp.ne.s32.totalorder %s40, %s43
      %p52 = scmp.eq.s32.totalorder %s23, 7
      %p53 = por %p51, %p52
      %p54 = scmp.ne.s32.totalorder %s43, %s44
      %p55 = scmp.eq.s32.totalorder %s23, 0
      %p56 = por %p54, %p55
      %p57 = scmp.ne.s32.totalorder %s43, %s44
      %p58 = scmp.eq.s32.totalorder %s24, 7
      %p59 = por %p57, %p58
      %p61 = scmp.ne.s32.totalorder %s44, %s60
      %p62 = scmp.eq.s32.totalorder %s24, 0
      %p63 = por %p61, %p62
      %s65 = sadd.s32 %s64, 1
      %p68 = scmp.eq.s32.totalorder %s18, 7
      %p69 = scmp.ne.s32.totalorder %s64, %s66
      %p70 = scmp.eq.s32.totalorder %s18, 0
      %p71 = por %p69, %p70
      %p72 = scmp.ne.s32.totalorder %s64, %s66
      %p73 = scmp.eq.s32.totalorder %s23, 7
      %p74 = por %p72, %p73
      %p75 = scmp.ne.s32.totalorder %s66, %s67
      %p76 = scmp.eq.s32.totalorder %s23, 0
      %p77 = por %p75, %p76
      %p78 = scmp.ne.s32.totalorder %s66, %s67
      %p79 = scmp.eq.s32.totalorder %s24, 7
      %p80 = por %p78, %p79
      %p82 = scmp.ne.s32.totalorder %s67, %s81
      %p83 = scmp.eq.s32.totalorder %s24, 0
      %p84 = por %p82, %p83
      %s86 = sadd.s32 %s85, 1
      %p89 = scmp.eq.s32.totalorder %s18, 7
      %p90 = scmp.ne.s32.totalorder %s85, %s87
      %p91 = scmp.eq.s32.totalorder %s18, 0
      %p92 = por %p90, %p91
      %p93 = scmp.ne.s32.totalorder %s85, %s87
      %p94 = scmp.eq.s32.totalorder %s23, 7
      %p95 = por %p93, %p94
      %p96 = scmp.ne.s32.totalorder %s87, %s88
      %p97 = scmp.eq.s32.totalorder %s23, 0
      %p98 = por %p96, %p97
      %p99 = scmp.ne.s32.totalorder %s87, %s88
      %p100 = scmp.eq.s32.totalorder %s24, 7
      %p101 = por %p99, %p100
      %p103 = scmp.ne.s32.totalorder %s88, %s102
      %p104 = scmp.eq.s32.totalorder %s24, 0
      %p105 = por %p103, %p104
      %s107 = sadd.s32 %s106, 1
      %p110 = scmp.eq.s32.totalorder %s18, 7
      %p111 = scmp.ne.s32.totalorder %s106, %s108
      %p112 = scmp.eq.s32.totalorder %s18, 0
      %p113 = por %p111, %p112
      %p114 = scmp.ne.s32.totalorder %s106, %s108
      %p115 = scmp.eq.s32.totalorder %s23, 7
      %p116 = por %p114, %p115
      %p117 = scmp.ne.s32.totalorder %s108, %s109
      %p118 = scmp.eq.s32.totalorder %s23, 0
      %p119 = por %p117, %p118
      %p120 = scmp.ne.s32.totalorder %s108, %s109
      %p121 = scmp.eq.s32.totalorder %s24, 7
      %p122 = por %p120, %p121
      %p124 = scmp.ne.s32.totalorder %s109, %s123
      %p125 = scmp.eq.s32.totalorder %s24, 0
      %p126 = por %p124, %p125
      %s128 = sadd.s32 %s127, 1
      %p131 = scmp.eq.s32.totalorder %s18, 7
      %p132 = scmp.ne.s32.totalorder %s127, %s129
      %p133 = scmp.eq.s32.totalorder %s18, 0
      %p134 = por %p132, %p133
      %p135 = scmp.ne.s32.totalorder %s127, %s129
      %p136 = scmp.eq.s32.totalorder %s23, 7
      %p137 = por %p135, %p136
      %p138 = scmp.ne.s32.totalorder %s129, %s130
      %p139 = scmp.eq.s32.totalorder %s23, 0
      %p140 = por %p138, %p139
      %p141 = scmp.ne.s32.totalorder %s129, %s130
      %p142 = scmp.eq.s32.totalorder %s24, 7
      %p143 = por %p141, %p142
      %p145 = scmp.ne.s32.totalorder %s130, %s144
      %p146 = scmp.eq.s32.totalorder %s24, 0
      %p147 = por %p145, %p146
      %s149 = sadd.s32 %s148, 1
      %p152 = scmp.eq.s32.totalorder %s18, 7
      %p153 = scmp.ne.s32.totalorder %s148, %s150
      %p154 = scmp.eq.s32.totalorder %s18, 0
      %p155 = por %p153, %p154
      %p156 = scmp.ne.s32.totalorder %s148, %s150
      %p157 = scmp.eq.s32.totalorder %s23, 7
      %p158 = por %p156, %p157
      %p159 = scmp.ne.s32.totalorder %s150, %s151
      %p160 = scmp.eq.s32.totalorder %s23, 0
      %p161 = por %p159, %p160
      %p162 = scmp.ne.s32.totalorder %s150, %s151
      %p163 = scmp.eq.s32.totalorder %s24, 7
      %p164 = por %p162, %p163
      %p166 = scmp.ne.s32.totalorder %s151, %s165
      %p167 = scmp.eq.s32.totalorder %s24, 0
      %p168 = por %p166, %p167
      %s170 = sadd.s32 %s169, 1
      %p173 = scmp.eq.s32.totalorder %s18, 7
      %p174 = scmp.ne.s32.totalorder %s169, %s171
      %p175 = scmp.eq.s32.totalorder %s18, 0
      %p176 = por %p174, %p175
      %p177 = scmp.ne.s32.totalorder %s169, %s171
      %p178 = scmp.eq.s32.totalorder %s23, 7
      %p179 = por %p177, %p178
      %p180 = scmp.ne.s32.totalorder %s171, %s172
      %p181 = scmp.eq.s32.totalorder %s23, 0
      %p182 = por %p180, %p181
      %p183 = scmp.ne.s32.totalorder %s171, %s172
      %p184 = scmp.eq.s32.totalorder %s24, 7
      %p185 = por %p183, %p184
      %p187 = scmp.ne.s32.totalorder %s172, %s186
      %p188 = scmp.eq.s32.totalorder %s24, 0
      %p189 = por %p187, %p188
      %s191 = sadd.s32 %s190, 1
      %p194 = scmp.eq.s32.totalorder %s18, 7
      %p195 = scmp.ne.s32.totalorder %s190, %s192
      %p196 = scmp.eq.s32.totalorder %s18, 0
      %p197 = por %p195, %p196
      %p198 = scmp.ne.s32.totalorder %s190, %s192
      %p199 = scmp.eq.s32.totalorder %s23, 7
      %p200 = por %p198, %p199
      %p201 = scmp.ne.s32.totalorder %s192, %s193
      %p202 = scmp.eq.s32.totalorder %s23, 0
      %p203 = por %p201, %p202
      %p204 = scmp.ne.s32.totalorder %s192, %s193
      %p205 = scmp.eq.s32.totalorder %s24, 7
      %p206 = por %p204, %p205
      %p208 = scmp.ne.s32.totalorder %s193, %s207
      %p209 = scmp.eq.s32.totalorder %s24, 0
      %p210 = por %p208, %p209
      %s212 = sadd.s32 %s211, 1
      %p215 = scmp.eq.s32.totalorder %s18, 7
      %p216 = scmp.ne.s32.totalorder %s211, %s213
      %p217 = scmp.eq.s32.totalorder %s18, 0
      %p218 = por %p216, %p217
      %p219 = scmp.ne.s32.totalorder %s211, %s213
      %p220 = scmp.eq.s32.totalorder %s23, 7
      %p221 = por %p219, %p220
      %p222 = scmp.ne.s32.totalorder %s213, %s214
      %p223 = scmp.eq.s32.totalorder %s23, 0
      %p224 = por %p222, %p223
      %p225 = scmp.ne.s32.totalorder %s213, %s214
      %p226 = scmp.eq.s32.totalorder %s24, 7
      %p227 = por %p225, %p226
      %p229 = scmp.ne.s32.totalorder %s214, %s228
      %p230 = scmp.eq.s32.totalorder %s24, 0
      %p231 = por %p229, %p230
      %s232 = ssub.s32 %s25, %s37
      %p233 = scmp.eq.s32.totalorder %s232, 0
      %s235 = sadd.s32 %s234, 1
      %s236 = scalar_select %p233, %s234, %s235
      %p239 = pneg %p233
      %p240 = scmp.eq.s32.totalorder %s18, 7
      %p241 = por %p239, %p240
      %p242 = scmp.ne.s32.totalorder %s234, %s237
      %p243 = scmp.eq.s32.totalorder %s18, 0
      %p244 = por %p242, %p243
      %p245 = scmp.ne.s32.totalorder %s234, %s237
      %p246 = scmp.eq.s32.totalorder %s23, 7
      %p247 = por %p245, %p246
      %p248 = scmp.ne.s32.totalorder %s237, %s238
      %p249 = scmp.eq.s32.totalorder %s23, 0
      %p250 = por %p248, %p249
      %p251 = scmp.ne.s32.totalorder %s237, %s238
      %p252 = scmp.eq.s32.totalorder %s24, 7
      %p253 = por %p251, %p252
      %p255 = scmp.ne.s32.totalorder %s238, %s254
      %p256 = scmp.eq.s32.totalorder %s24, 0
      %p257 = por %p255, %p256
      %p258 = scmp.le.s32.totalorder 1, %s18
      %p259 = scmp.lt.s32.totalorder %s18, 9
      %p260 = pnand %p258, %p259
      %p261 = pneg %p260
      // Predicated region
      $region9: #{tpu_custom_call.1} parent=5 // pred_check
        _
      $region10: #{tpu_custom_call.1} parent=5 // pred_check_branch
        %263 = sbr.rel (%p260) target = $region12
      $region11: #{tpu_custom_call.1} parent=5 // pred_region
        %s264 = ssub.s32 %s18, 1
        // Predicated region
        $region13: #{tpu_custom_call.1} parent=11 // pred_check
          %p265 = pneg %p77
        $region14: #{tpu_custom_call.1} parent=11 // pred_check_branch
          %267 = sbr.rel (%p265) target = $region16
        $region15: #{tpu_custom_call.1} parent=11 // pred_region
          _
        $region16: #{tpu_custom_call.1} parent=11 // pred_fallthru
          _
        // Predicated region
        $region17: #{tpu_custom_call.1} parent=11 // pred_check
          %p268 = pneg %p98
        $region18: #{tpu_custom_call.1} parent=11 // pred_check_branch
          %270 = sbr.rel (%p268) target = $region20
        $region19: #{tpu_custom_call.1} parent=11 // pred_region
          _
        $region20: #{tpu_custom_call.1} parent=11 // pred_fallthru
          _
        // Predicated region
        $region21: #{tpu_custom_call.1} parent=11 // pred_check
          %p271 = pneg %p119
        $region22: #{tpu_custom_call.1} parent=11 // pred_check_branch
          %273 = sbr.rel (%p271) target = $region24
        $region23: #{tpu_custom_call.1} parent=11 // pred_region
          _
        $region24: #{tpu_custom_call.1} parent=11 // pred_fallthru
          _
        // Predicated region
        $region25: #{tpu_custom_call.1} parent=11 // pred_check
          %p274 = pneg %p140
        $region26: #{tpu_custom_call.1} parent=11 // pred_check_branch
          %276 = sbr.rel (%p274) target = $region28
        $region27: #{tpu_custom_call.1} parent=11 // pred_region
          _
        $region28: #{tpu_custom_call.1} parent=11 // pred_fallthru
          _
        // Predicated region
        $region29: #{tpu_custom_call.1} parent=11 // pred_check
          %p277 = pneg %p161
        $region30: #{tpu_custom_call.1} parent=11 // pred_check_branch
          %279 = sbr.rel (%p277) target = $region32
        $region31: #{tpu_custom_call.1} parent=11 // pred_region
          _
        $region32: #{tpu_custom_call.1} parent=11 // pred_fallthru
          _
        // Predicated region
        $region33: #{tpu_custom_call.1} parent=11 // pred_check
          %p280 = pneg %p182
        $region34: #{tpu_custom_call.1} parent=11 // pred_check_branch
          %282 = sbr.rel (%p280) target = $region36
        $region35: #{tpu_custom_call.1} parent=11 // pred_region
          _
        $region36: #{tpu_custom_call.1} parent=11 // pred_fallthru
          _
        // Predicated region
        $region37: #{tpu_custom_call.1} parent=11 // pred_check
          %p283 = pneg %p203
        $region38: #{tpu_custom_call.1} parent=11 // pred_check_branch
          %285 = sbr.rel (%p283) target = $region40
        $region39: #{tpu_custom_call.1} parent=11 // pred_region
          _
        $region40: #{tpu_custom_call.1} parent=11 // pred_fallthru
          _
        // Predicated region
        $region41: #{tpu_custom_call.1} parent=11 // pred_check
          %p286 = pneg %p224
        $region42: #{tpu_custom_call.1} parent=11 // pred_check_branch
          %288 = sbr.rel (%p286) target = $region44
        $region43: #{tpu_custom_call.1} parent=11 // pred_region
          _
        $region44: #{tpu_custom_call.1} parent=11 // pred_fallthru
          _
      $region12: #{tpu_custom_call.1} parent=5 // pred_fallthru
        _
      %p289 = scmp.lt.s32.totalorder %s18, 8
      // Predicated region
      $region45: #{tpu_custom_call.1} parent=5 // pred_check
        %p290 = pneg %p289
      $region46: #{tpu_custom_call.1} parent=5 // pred_check_branch
        %292 = sbr.rel (%p290) target = $region48
      $region47: #{tpu_custom_call.1} parent=5 // pred_region
        // Predicated region
        $region49: #{tpu_custom_call.1} parent=47 // pred_check
          %p293 = pneg %p50
        $region50: #{tpu_custom_call.1} parent=47 // pred_check_branch
          %295 = sbr.rel (%p293) target = $region52
        $region51: #{tpu_custom_call.1} parent=47 // pred_region
          %p296 = scmp.lt.s32.totalorder %s25, 1
          %s297 = scalar_select %p296, %s25, 1
          %s298 = smul.addr %s297, 8
          %s299 = scalar_lea.vmem %s0, %s298
        $region52: #{tpu_custom_call.1} parent=47 // pred_fallthru
          _
      $region48: #{tpu_custom_call.1} parent=5 // pred_fallthru
        _
      %p300 = scmp.le.s32.totalorder 1, %s18
      %p301 = scmp.lt.s32.totalorder %s18, 9
      %p302 = pnand %p300, %p301
      %p303 = pneg %p302
      // Predicated region
      $region53: #{tpu_custom_call.1} parent=5 // pred_check
        _
      $region54: #{tpu_custom_call.1} parent=5 // pred_check_branch
        %305 = sbr.rel (%p302) target = $region56
      $region55: #{tpu_custom_call.1} parent=5 // pred_region
        %s306 = ssub.s32 %s18, 1
        %p307 = scmp.lt.s32.totalorder %s27, 1
        %s308 = scalar_select %p307, %s27, 1
        %s309 = smul.addr %s308, 8
        %s310 = scalar_lea.vmem %s0, %s309
        %p311 = pneg %p56
        %p312 = pneg %p53
        %p313 = pneg %p77
        %p314 = pneg %p74
        %p315 = pneg %p98
        %p316 = pneg %p95
        %p317 = pneg %p119
        %p318 = pneg %p116
        %p319 = pneg %p140
        %p320 = pneg %p137
        %p321 = pneg %p161
        %p322 = pneg %p158
        %p323 = pneg %p182
        %p324 = pneg %p179
        %p325 = pneg %p203
        %p326 = pneg %p200
        %p327 = pneg %p224
        %p328 = pneg %p221
        %p329 = pneg %p250
        %p330 = pneg %p247
        %s331 = sand.u32 %s237, 1
        %s332 = scalar_lea.sflag [#allocation5], %s331
        %s333 = sand.u32 %s237, 1
        %s334 = smul.addr %s333, 8
        %s335 = scalar_lea.vmem [#allocation4], %s334
        %p336 = scmp.lt.s32.totalorder %s27, 1
        %s337 = scalar_select %p336, %s27, 1
        %s338 = smul.addr %s337, 8
        %s339 = scalar_lea.vmem %s0, %s338
        %p341 = scmp.eq.s32.totalorder %s28, 0
        // Predicated region
        $region57: #{tpu_custom_call.1} parent=55 // pred_check
          %p342 = pneg %p341
        $region58: #{tpu_custom_call.1} parent=55 // pred_check_branch
          %344 = sbr.rel (%p342) target = $region60
        $region59: #{tpu_custom_call.1} parent=55 // pred_region
          %v345 = vld [vmem:[%s339] sm:$0xff]
          %v346 = vld [vmem:[%s3] sm:$0x1]
          %v347 = vld [vmem:[%s4] sm:$0x1]
          %vm348 = vcmask 261120
          %v349 = vsel %vm348, %v345, 0.0
          %350 = vadd.xlane.f32.xlu0 %v349
          %v351 = vpop.xlane.xlu0 %350
          %v352 = vrcp.pop 32.0
          %v353 = vmul.f32 %v351, %v352
          %v354 = vsub.f32 %v345, %v353
          %v355 = vmul.f32 %v354, %v354
          %v356 = vsel %vm348, %v355, 0.0
          %357 = vadd.xlane.f32.xlu0 %v356
          %v358 = vpop.xlane.xlu0 %357
          %v359 = vmul.f32 %v358, %v352
          %v360 = vadd.f32 %v359, 1e-05
          %v361 = vrsqrt.pop %v360
          %v362 = vmul.f32 %v354, %v361
          %v364 = vlaneseq
          %v365 = vshrl.u32 %v364, 7
          %v366 = vsub.s32 0, %v365
          %v367 = vrot.slane %v346, %v366
          %v369 = vmul.f32 %v362, %v367
          %v371 = vlaneseq
          %v372 = vshrl.u32 %v371, 7
          %v373 = vsub.s32 0, %v372
          %v374 = vrot.slane %v347, %v373
          %v376 = vadd.f32 %v369, %v374
          %v377 = vpack.c.bf16 %v376, %v376
          %vm378 = vcmask 257024
          %379 = vst.msk [vmem:[#allocation2] sm:$0xf] %vm378, %v377
        $region60: #{tpu_custom_call.1} parent=55 // pred_fallthru
          _
        %v380 = vld [vmem:[#allocation2] sm:$0xf]
        %s381 = smul.u32 %s28, 4
        %s382 = smul.addr %s381, 4
        %s383 = scalar_lea.vmem %s5, %s382
        %v384 = vld [vmem:[%s383] sm:$0xf]
        %v385 = vld [vmem:[%s383 + $0x4] sm:$0xf]
        %v386 = vld [vmem:[%s383 + $0x8] sm:$0xf]
        %v387 = vld [vmem:[%s383 + $0xc] sm:$0xf]
        %s388 = scalar_lea.vmem %s6, %s28
        %v389 = vld [vmem:[%s388] sm:$0x1]
        %v391 = vlaneseq
        %v392 = vshrl.u32 %v391, 7
        %v393 = vsub.s32 0, %v392
        %v394 = vrot.slane %v389, %v393
        %v400 = vunpack.c.l.b16 %v384
        %v401 = vunpack.c.l.b16 %v385
        %v402 = vunpack.c.l.b16 %v386
        %v403 = vunpack.c.l.b16 %v387
        %v404 = vpack.c.b16 %v401, %v400
        %v405 = vpack.c.b16 %v403, %v402
        %vm408 = vcmask 261120
        %v410 = vsel %vm408, %v380, 0
        %412 = vmatprep.subr.bf16.mxu0 0
        %413 = vmatpush1.bf16.msra.mxu0 0
        %414 = vmatprep.subr.bf16.mxu0 0
        %415 = vmatpush1.bf16.msra.mxu0 0
        %416 = vmatprep.subr.bf16.mxu0 0
        %417 = vmatpush1.bf16.msra.mxu0 0
        %418 = vmatprep.subr.bf16.mxu0 0
        %419 = vmatpush1.bf16.msra.mxu0 0
        %420 = vmatprep.subr.bf16.mxu0 0
        %421 = vmatpush1.bf16.msra.mxu0 0
        %422 = vmatprep.subr.bf16.mxu0 0
        %423 = vmatpush1.bf16.msra.mxu0 0
        %424 = vmatprep.subr.bf16.mxu0 0
        %425 = vmatpush1.bf16.msra.mxu0 %v405
        %426 = vmatprep.subr.bf16.mxu0 0
        %427 = vmatpush1.bf16.msra.mxu0 %v404
        %428 = vmatprep.subr.bf16.mxu0 0
        %429 = vmatpush2.bf16.msra.mxu0 0
        %430 = vmatprep.subr.bf16.mxu0 0
        %431 = vmatpush2.bf16.msra.mxu0 0
        %432 = vmatprep.subr.bf16.mxu0 0
        %433 = vmatpush2.bf16.msra.mxu0 0
        %434 = vmatprep.subr.bf16.mxu0 0
        %435 = vmatpush2.bf16.msra.mxu0 0
        %436 = vmatprep.subr.bf16.mxu0 0
        %437 = vmatpush2.bf16.msra.mxu0 0
        %438 = vmatprep.subr.bf16.mxu0 0
        %439 = vmatpush2.bf16.msra.mxu0 0
        %440 = vmatprep.subr.bf16.mxu0 0
        %441 = vmatpush2.bf16.msra.mxu0 0
        %442 = vmatprep.subr.bf16.mxu0 0
        %443 = vmatpush2.bf16.msra.mxu0 0
        %444 = vmatprep.mubr.bf16.mxu0 0
        %445 = vmatmul.mubr.bf16.gmra.mxu0 %v410
        %v446 = vpop.f32.mrf.mxu0
        %v447 = vadd.f32 %v394, %v446
        %v448 = vpop.f32.mrf.mxu0
        %v449 = vpop.f32.mrf.mxu0
        %v450 = vpop.f32.mrf.mxu0
        %451 = vdwg.mxu0
        %v452 = vld [vmem:[%s1] sm:$0xff]
        %v453 = vld [vmem:[%s2] sm:$0xff]
        %455 = vrot.lane.b32.xlu0 %v447, 124
        %v456 = vpop.permute.xlu0 %455
        %458 = vrot.lane.b32.xlu0 %v447, 4
        %v459 = vpop.permute.xlu0 %458
        %vm461 = vcmask 31744
        %v462 = vsel %vm461, %v456, %v459
        %v463 = vmul.f32 %v447, %v452
        %v464 = vmul.f32 %v462, %v453
        %v465 = vadd.f32 %v463, %v464
        %466 = vrot.lane.b32.xlu0 %v447, 116
        %v467 = vpop.permute.xlu0 %466
        %v469 = vsel %vm461, %v467, %v456
        %471 = vrot.lane.b32.xlu0 %v452, 8
        %v472 = vpop.permute.xlu0 %471
        %v474 = vmul.f32 %v447, %v472
        %v475 = vmul.f32 %v469, %v453
        %477 = vrot.lane.b32.xlu0 %v475, 8
        %v478 = vpop.permute.xlu0 %477
        %v480 = vadd.f32 %v474, %v478
        %v481 = vpack.c.bf16 %v465, %v465
        %v482 = vpack.c.bf16 %v480, %v480
        %484 = vrot.lane.b32.xlu0 %v482, 120
        %v485 = vpop.permute.xlu0 %484
        %vm486 = vcmask 64512
        %v488 = vsel %vm486, %v481, 0
        %v491 = vsel %vm486, %v485, 0
        %493 = vmatprep.subr.bf16.mxu0 0
        %494 = vmatpush1.bf16.xpose.msra.mxu0 0
        %495 = vmatprep.subr.bf16.mxu0 0
        %496 = vmatpush1.bf16.xpose.msra.mxu0 0
        %497 = vmatprep.subr.bf16.mxu0 0
        %498 = vmatpush1.bf16.xpose.msra.mxu0 0
        %499 = vmatprep.subr.bf16.mxu0 0
        %500 = vmatpush1.bf16.xpose.msra.mxu0 0
        %501 = vmatprep.subr.bf16.mxu0 0
        %502 = vmatpush1.bf16.xpose.msra.mxu0 0
        %503 = vmatprep.subr.bf16.mxu0 0
        %504 = vmatpush1.bf16.xpose.msra.mxu0 0
        %505 = vmatprep.subr.bf16.mxu0 0
        %506 = vmatpush1.bf16.xpose.msra.mxu0 0
        %507 = vmatprep.subr.bf16.mxu0 0
        %508 = vmatpush1.bf16.xpose.msra.mxu0 %v491
        %509 = vmatprep.subr.bf16.mxu0 0
        %510 = vmatpush2.bf16.xpose.msra.mxu0 0
        %511 = vmatprep.subr.bf16.mxu0 0
        %512 = vmatpush2.bf16.xpose.msra.mxu0 0
        %513 = vmatprep.subr.bf16.mxu0 0
        %514 = vmatpush2.bf16.xpose.msra.mxu0 0
        %515 = vmatprep.subr.bf16.mxu0 0
        %516 = vmatpush2.bf16.xpose.msra.mxu0 0
        %517 = vmatprep.subr.bf16.mxu0 0
        %518 = vmatpush2.bf16.xpose.msra.mxu0 0
        %519 = vmatprep.subr.bf16.mxu0 0
        %520 = vmatpush2.bf16.xpose.msra.mxu0 0
        %521 = vmatprep.subr.bf16.mxu0 0
        %522 = vmatpush2.bf16.xpose.msra.mxu0 0
        %523 = vmatprep.subr.bf16.mxu0 0
        %524 = vmatpush2.bf16.xpose.msra.mxu0 0
        %525 = vmatprep.mubr.bf16.mxu0 0
        %526 = vmatmul.mubr.bf16.gmra.mxu0 %v488
        %v527 = vpop.f32.mrf.mxu0
        %v528 = vadd.f32 0.0, %v527
        %v529 = vpop.f32.mrf.mxu0
        %v530 = vpop.f32.mrf.mxu0
        %v531 = vpop.f32.mrf.mxu0
        %532 = vdwg.mxu0
        %v533 = vsel %vm486, %v528, -inf
        %534 = vmax.xlane.f32.xlu0 %v533
        %v535 = vpop.xlane.xlu0 %534
        %v536 = vsub.f32 %v528, %v535
        %v537 = vpack.c.bf16 %v536, %v536
        %v539 = vmul.bf16 %v537, 1069105081
        %v540 = vpow.bf16.pop %v539
        %v541 = vunpack.c.l.bf16 %v540
        %v542 = vsel %vm486, %v541, 0.0
        %543 = vadd.xlane.f32.xlu0 %v542
        %v544 = vpop.xlane.xlu0 %543
        %v545 = vpack.c.bf16 %v447, %v447
        %547 = vrot.lane.b32.xlu0 %v545, 112
        %v548 = vpop.permute.xlu0 %547
        %v550 = vsel %vm486, %v540, 0
        %vm552 = vcmask 1043456
        %v554 = vsel %vm552, %v548, 0
        %556 = vmatprep.subr.bf16.mxu0 0
        %557 = vmatpush1.bf16.msra.mxu0 0
        %558 = vmatprep.subr.bf16.mxu0 0
        %559 = vmatpush1.bf16.msra.mxu0 0
        %560 = vmatprep.subr.bf16.mxu0 0
        %561 = vmatpush1.bf16.msra.mxu0 0
        %562 = vmatprep.subr.bf16.mxu0 0
        %563 = vmatpush1.bf16.msra.mxu0 0
        %564 = vmatprep.subr.bf16.mxu0 0
        %565 = vmatpush1.bf16.msra.mxu0 0
        %566 = vmatprep.subr.bf16.mxu0 0
        %567 = vmatpush1.bf16.msra.mxu0 0
        %568 = vmatprep.subr.bf16.mxu0 0
        %569 = vmatpush1.bf16.msra.mxu0 0
        %570 = vmatprep.subr.bf16.mxu0 0
        %571 = vmatpush1.bf16.msra.mxu0 %v554
        %572 = vmatprep.subr.bf16.mxu0 0
        %573 = vmatpush2.bf16.msra.mxu0 0
        %574 = vmatprep.subr.bf16.mxu0 0
        %575 = vmatpush2.bf16.msra.mxu0 0
        %576 = vmatprep.subr.bf16.mxu0 0
        %577 = vmatpush2.bf16.msra.mxu0 0
        %578 = vmatprep.subr.bf16.mxu0 0
        %579 = vmatpush2.bf16.msra.mxu0 0
        %580 = vmatprep.subr.bf16.mxu0 0
        %581 = vmatpush2.bf16.msra.mxu0 0
        %582 = vmatprep.subr.bf16.mxu0 0
        %583 = vmatpush2.bf16.msra.mxu0 0
        %584 = vmatprep.subr.bf16.mxu0 0
        %585 = vmatpush2.bf16.msra.mxu0 0
        %586 = vmatprep.subr.bf16.mxu0 0
        %587 = vmatpush2.bf16.msra.mxu0 0
        %588 = vmatprep.mubr.bf16.mxu0 0
        %589 = vmatmul.mubr.bf16.gmra.mxu0 %v550
        %v590 = vpop.f32.mrf.mxu0
        %v591 = vadd.f32 0.0, %v590
        %v592 = vpop.f32.mrf.mxu0
        %v593 = vpop.f32.mrf.mxu0
        %v594 = vpop.f32.mrf.mxu0
        %595 = vdwg.mxu0
        %v596 = vrcp.pop %v544
        %v597 = vmul.f32 %v591, %v596
        %v598 = vpack.c.bf16 %v597, %v597
        %s599 = smul.addr %s28, 4
        %s600 = scalar_lea.vmem [#allocation3], %s599
        %vm601 = vcmask 60416
        %602 = vst.msk [vmem:[%s600] sm:$0xf] %vm601, %v598
        %p603 = scmp.eq.s32.totalorder %s28, 3
        // Predicated region
        $region61: #{tpu_custom_call.1} parent=55 // pred_check
          %p604 = pneg %p603
        $region62: #{tpu_custom_call.1} parent=55 // pred_check_branch
          %606 = sbr.rel (%p604) target = $region64
        $region63: #{tpu_custom_call.1} parent=55 // pred_region
          %v607 = vld [vmem:[#allocation3] sm:$0xf]
          %s608 = scalar_lea.vmem [#allocation3], 4
          %v609 = vld [vmem:[%s608] sm:$0xf]
          %s610 = scalar_lea.vmem [#allocation3], 8
          %v611 = vld [vmem:[%s610] sm:$0xf]
          %s612 = scalar_lea.vmem [#allocation3], 12
          %v613 = vld [vmem:[%s612] sm:$0xf]
          %v615 = vunpack.c.l.b16 %v609
          %v616 = vpack.c.b16 %v615, %v615
          %617 = vrot.lane.b32.xlu0 %v616, 8
          %v618 = vpop.permute.xlu0 %617
          %v620 = vunpack.c.l.b16 %v611
          %v621 = vpack.c.b16 %v620, %v620
          %622 = vrot.lane.b32.xlu0 %v621, 16
          %v623 = vpop.permute.xlu0 %622
          %v625 = vunpack.c.l.b16 %v613
          %v626 = vpack.c.b16 %v625, %v625
          %627 = vrot.lane.b32.xlu0 %v626, 24
          %v628 = vpop.permute.xlu0 %627
          %v631 = vsel %vm486, %v607, %v618
          %vm632 = vcmask 130048
          %v634 = vsel %vm632, %v631, %v623
          %vm635 = vcmask 195584
          %v637 = vsel %vm635, %v634, %v628
          %v638 = vld [vmem:[%s7] sm:$0xf]
          %v639 = vld [vmem:[%s7 + $0x4] sm:$0xf]
          %v640 = vld [vmem:[%s7 + $0x8] sm:$0xf]
          %v641 = vld [vmem:[%s7 + $0xc] sm:$0xf]
          %v646 = vunpack.c.l.b16 %v638
          %v647 = vunpack.c.l.b16 %v639
          %v648 = vunpack.c.l.b16 %v640
          %v649 = vunpack.c.l.b16 %v641
          %v650 = vpack.c.b16 %v647, %v646
          %v651 = vpack.c.b16 %v649, %v648
          %v654 = vsel %vm408, %v637, 0
          %656 = vmatprep.subr.bf16.mxu0 0
          %657 = vmatpush1.bf16.msra.mxu0 0
          %658 = vmatprep.subr.bf16.mxu0 0
          %659 = vmatpush1.bf16.msra.mxu0 0
          %660 = vmatprep.subr.bf16.mxu0 0
          %661 = vmatpush1.bf16.msra.mxu0 0
          %662 = vmatprep.subr.bf16.mxu0 0
          %663 = vmatpush1.bf16.msra.mxu0 0
          %664 = vmatprep.subr.bf16.mxu0 0
          %665 = vmatpush1.bf16.msra.mxu0 0
          %666 = vmatprep.subr.bf16.mxu0 0
          %667 = vmatpush1.bf16.msra.mxu0 0
          %668 = vmatprep.subr.bf16.mxu0 0
          %669 = vmatpush1.bf16.msra.mxu0 %v651
          %670 = vmatprep.subr.bf16.mxu0 0
          %671 = vmatpush1.bf16.msra.mxu0 %v650
          %672 = vmatprep.subr.bf16.mxu0 0
          %673 = vmatpush2.bf16.msra.mxu0 0
          %674 = vmatprep.subr.bf16.mxu0 0
          %675 = vmatpush2.bf16.msra.mxu0 0
          %676 = vmatprep.subr.bf16.mxu0 0
          %677 = vmatpush2.bf16.msra.mxu0 0
          %678 = vmatprep.subr.bf16.mxu0 0
          %679 = vmatpush2.bf16.msra.mxu0 0
          %680 = vmatprep.subr.bf16.mxu0 0
          %681 = vmatpush2.bf16.msra.mxu0 0
          %682 = vmatprep.subr.bf16.mxu0 0
          %683 = vmatpush2.bf16.msra.mxu0 0
          %684 = vmatprep.subr.bf16.mxu0 0
          %685 = vmatpush2.bf16.msra.mxu0 0
          %686 = vmatprep.subr.bf16.mxu0 0
          %687 = vmatpush2.bf16.msra.mxu0 0
          %688 = vmatprep.mubr.bf16.mxu0 0
          %689 = vmatmul.mubr.bf16.gmra.mxu0 %v654
          %v690 = vpop.f32.mrf.mxu0
          %v691 = vadd.f32 0.0, %v690
          %v692 = vpop.f32.mrf.mxu0
          %v693 = vpop.f32.mrf.mxu0
          %v694 = vpop.f32.mrf.mxu0
          %695 = vdwg.mxu0
          %v696 = vld [vmem:[%s339] sm:$0xff]
          %v697 = vadd.f32 %v696, %v691
          %v698 = vld [vmem:[%s8] sm:$0x1]
          %v700 = vlaneseq
          %v701 = vshrl.u32 %v700, 7
          %v702 = vsub.s32 0, %v701
          %v703 = vrot.slane %v698, %v702
          %v705 = vadd.f32 %v697, %v703
          %706 = vst.msk [vmem:[%s335] sm:$0xff] %vm408, %v705
        $region64: #{tpu_custom_call.1} parent=55 // pred_fallthru
          _
        %s707 = sand.u32 %s237, 1
        %s708 = scalar_lea.sflag [#allocation5], %s707
        %s709 = sand.u32 %s237, 1
        %s710 = smul.addr %s709, 8
        %s711 = scalar_lea.vmem [#allocation4], %s710
        // Predicated region
        $region65: #{tpu_custom_call.1} parent=55 // pred_check
          %p712 = pneg %p247
        $region66: #{tpu_custom_call.1} parent=55 // pred_check_branch
          %714 = sbr.rel (%p712) target = $region68
        $region67: #{tpu_custom_call.1} parent=55 // pred_region
          %s716 = ssub.s32 128, 128
          %717 = vsyncadd %s708, %s716
          %s718 = smul.addr %s27, 128
          %s719 = scalar_lea.hbm %s9, %s718
          %s721 = sshll.u32 %s711, 4
          %s722 = int_to_ptr.vmem [resolvable:$true] %s721
          %724 = dma.vmem_to_hbm [thread:$0]  %s722, 128, %s719, %s708
        $region68: #{tpu_custom_call.1} parent=55 // pred_fallthru
          _
      $region56: #{tpu_custom_call.1} parent=5 // pred_fallthru
        _
      %p725 = scmp.le.s32.totalorder 2, %s18
      // Predicated region
      $region69: #{tpu_custom_call.1} parent=5 // pred_check
        %p726 = pneg %p725
      $region70: #{tpu_custom_call.1} parent=5 // pred_check_branch
        %728 = sbr.rel (%p726) target = $region72
      $region71: #{tpu_custom_call.1} parent=5 // pred_region
        %s729 = ssub.s32 %s18, 2
        // Predicated region
        $region73: #{tpu_custom_call.1} parent=71 // pred_check
          %p730 = pneg %p253
        $region74: #{tpu_custom_call.1} parent=71 // pred_check_branch
          %732 = sbr.rel (%p730) target = $region76
        $region75: #{tpu_custom_call.1} parent=71 // pred_region
          %s733 = sand.u32 %s238, 1
          %s734 = scalar_lea.sflag [#allocation5], %s733
          %s735 = sand.u32 %s238, 1
          %s736 = smul.addr %s735, 8
          %s737 = scalar_lea.vmem [#allocation4], %s736
          %738 = dma.done %s734, 128
        $region76: #{tpu_custom_call.1} parent=71 // pred_fallthru
          _
      $region72: #{tpu_custom_call.1} parent=5 // pred_fallthru
        _
    $region6: #{tpu_custom_call.1} parent=1 // loop_footer
      %s22 = sadd.s32 1, %s18
    $region7: #{tpu_custom_call.1} parent=1 // loop_footer_branch
      %17 = sbr.rel target = $region3
    $region8: #{tpu_custom_call.1} parent=1 // loop_exit
      _
    %739 = vsyncpa [#allocation5], 1
    %s740 = scalar_lea.sflag [#allocation5], 1
    %741 = vsyncpa %s740, 1

</llo_original>
